<compile_context>
chip_gen: v5e
topology: v5e:2x2
jax: 0.10.0
libtpu: 0.0.40
codegen_flags: <defaults>
</compile_context>

<pallas_src>
import functools

import jax
import jax.numpy as jnp
from jax.experimental import pallas as pl
from jax.experimental.pallas import tpu as pltpu


def _round_up(x, m):
    return (x + m - 1) // m * m


def _patch_embed_kernel(p_ref, w_ref, pb_ref, out_ref):
    # p_ref:  (N_TILE, Kp)  bf16 — patch rows of ONE batch element
    # w_ref:  (Kp, Ep)      bf16 — projection weight (grid-invariant, 1 buffer)
    # pb_ref: (N_TILE, Ep)  f32  — pos_emb + conv_bias rows (batch-invariant)
    # out_ref:(N_TILE, Ep)  f32
    y = jnp.dot(p_ref[...], w_ref[...], preferred_element_type=jnp.float32)
    out_ref[...] = (y + pb_ref[...]).astype(out_ref.dtype)


@functools.partial(jax.jit, static_argnames=("patch_size",))
def patch_embedding(x, conv_weight, conv_bias, pos_emb, patch_size):
    """x: (B, C, H, W); conv_weight: (E, C, p, p); conv_bias: (E,);
    pos_emb: (N, E) with N = (H/p)*(W/p). Returns (B, N, E)."""
    B, C, H, W = x.shape
    E = conv_weight.shape[0]
    p = patch_size
    Hp, Wp = H // p, W // p
    N = Hp * Wp
    K = C * p * p

    # Lane-dense padding of the contraction / embedding dims (multiples of 128).
    Kp = _round_up(K, 128)
    Ep = _round_up(E, 128)

    # Balanced patch-row tile: multiple of 8 (sublane), <= 512 (v7x-safe),
    # and sized so Npad - N stays small.
    MAX_N_TILE = 512
    n_tiles = -(-N // MAX_N_TILE)
    N_TILE = _round_up(-(-N // n_tiles), 8)
    Npad = n_tiles * N_TILE

    # --- host glue (pure data movement, fused by XLA under this jit) --------
    # Cast to bf16 BEFORE the patchify transpose so the materialized patch
    # array (and the kernel's re-read of it) is half the bytes.
    # (B, C, Hp, p, Wp, p) -> (B, Hp, Wp, C, p, p) -> (B, N, K); K is flattened
    # in (c, ki, kj) order to match the Conv2d weight layout (E, C, p, p).
    patches = x.astype(jnp.bfloat16).reshape(B, C, Hp, p, Wp, p)
    patches = patches.transpose(0, 2, 4, 1, 3, 5).reshape(B, N, K)
    patches = jnp.pad(patches, ((0, 0), (0, Npad - N), (0, Kp - K)))

    # Conv2d weight (E, C, p, p) -> (K, E), bf16, padded.  Zero-padded K rows
    # do not change the dot product.
    w_flat = conv_weight.astype(jnp.bfloat16).reshape(E, K).T
    w_flat = jnp.pad(w_flat, ((0, Kp - K), (0, Ep - E)))

    # Fold the conv bias into the positional embedding ONCE (not duplicated
    # over batch): with batch as the inner grid axis its block index is
    # unchanged on batch revisits, so Pallas skips the re-DMA.
    posbias = (pos_emb + conv_bias[None, :]).astype(jnp.float32)     # (N, E)
    posbias = jnp.pad(posbias, ((0, Npad - N), (0, Ep - E)))         # (Npad, Ep)

    # Constant block index -> a single VMEM buffer for the weight is enough.
    w_spec = pl.BlockSpec((Kp, Ep), lambda n, b: (0, 0),
                          pipeline_mode=pl.Buffered(1))

    grid = (n_tiles, B)   # batch is the innermost (fastest-varying) axis
    out = pl.pallas_call(
        _patch_embed_kernel,
        out_shape=jax.ShapeDtypeStruct((B, Npad, Ep), jnp.float32),
        grid_spec=pltpu.PrefetchScalarGridSpec(
            num_scalar_prefetch=0,
            grid=grid,
            in_specs=[
                pl.BlockSpec((None, N_TILE, Kp), lambda n, b: (b, n, 0)),
                w_spec,
                pl.BlockSpec((N_TILE, Ep), lambda n, b: (n, 0)),
            ],
            out_specs=pl.BlockSpec((None, N_TILE, Ep), lambda n, b: (b, n, 0)),
        ),
        compiler_params=pltpu.CompilerParams(
            # Every (n, b) output tile is independent -> both axes parallel,
            # so megacore / the two v7x TensorCores can shard either axis.
            dimension_semantics=("parallel", "parallel"),
            vmem_limit_bytes=48 * 1024 * 1024,
        ),
    )(patches, w_flat, posbias)

    # Strip lane/row padding (a no-op when N and E are already aligned).
    return out[:, :N, :E].astype(x.dtype)


if __name__ == "__main__":
    # Small shapes consistent with the module:
    #   batch=2, in_channel=4, H=W=16, patch_size=4 -> N=16 patches, dim_emb=32
    B, C, H, W = 2, 4, 16, 16
    patch_size = 4
    dim_emb = 32
    N = (H // patch_size) * (W // patch_size)   # max_len = 16

    key = jax.random.PRNGKey(0)
    kx, kw, kb, kp = jax.random.split(key, 4)

    x = jax.random.normal(kx, (B, C, H, W), dtype=jnp.float32)
    conv_weight = jax.random.normal(
        kw, (dim_emb, C, patch_size, patch_size), dtype=jnp.float32) * 0.05
    conv_bias = jax.random.normal(kb, (dim_emb,), dtype=jnp.float32) * 0.05
    pos_emb = jax.random.normal(kp, (N, dim_emb), dtype=jnp.float32) * 0.1

    out = patch_embedding(x, conv_weight, conv_bias, pos_emb, patch_size)
    out = jax.block_until_ready(out)

    # Reference check (pure f32 JAX, same semantics as the PyTorch forward
    # with drop_rate=0 -> Identity dropout).
    patches_ref = x.reshape(B, C, H // patch_size, patch_size,
                            W // patch_size, patch_size)
    patches_ref = patches_ref.transpose(0, 2, 4, 1, 3, 5).reshape(B, N, -1)
    ref = patches_ref @ conv_weight.reshape(dim_emb, -1).T + conv_bias + pos_emb

    assert out.shape == (B, N, dim_emb)
    # Kernel uses bf16 MXU inputs with f32 accumulation -> loose tolerance
    # against the pure-f32 reference.
    assert jnp.allclose(out, ref, atol=3e-2, rtol=3e-2)
    print("KERNEL_OK")
</pallas_src>

<mosaic_0001>
module attributes {stable_mosaic.version = 11 : i64} {
  func.func @_patch_embed_kernel(%arg0: i32, %arg1: i32, %arg2: memref<1x16x128xbf16, #tpu.memory_space<vmem>>, %arg3: memref<128x128xbf16, #tpu.memory_space<vmem>>, %arg4: memref<16x128xf32, #tpu.memory_space<vmem>>, %arg5: memref<1x16x128xf32, #tpu.memory_space<vmem>>) attributes {dimension_semantics = [#tpu.dimension_semantics<parallel>, #tpu.dimension_semantics<parallel>], iteration_bounds = array<i64: 1, 2>, scalar_prefetch = 0 : i64, scratch_operands = 0 : i64, tpu.core_type = #tpu.core_type<tc>, window_params = [{transform_indices = @transform_0, window_bounds = array<i64: 1, 16, 128>}, {pipeline_mode = #tpu.pipeline_mode<synchronous>, transform_indices = @transform_1, window_bounds = array<i64: 128, 128>}, {transform_indices = @transform_2, window_bounds = array<i64: 16, 128>}, {transform_indices = @transform_3, window_bounds = array<i64: 1, 16, 128>}]} {
    %c0 = arith.constant 0 : index
    %c0_0 = arith.constant 0 : index
    %c0_1 = arith.constant 0 : index
    %0 = vector.load %arg2[%c0, %c0_0, %c0_1] : memref<1x16x128xbf16, #tpu.memory_space<vmem>>, vector<1x16x128xbf16>
    %1 = vector.shape_cast %0 : vector<1x16x128xbf16> to vector<16x128xbf16>
    %c0_2 = arith.constant 0 : index
    %c0_3 = arith.constant 0 : index
    %2 = vector.load %arg3[%c0_2, %c0_3] : memref<128x128xbf16, #tpu.memory_space<vmem>>, vector<128x128xbf16>
    %cst = arith.constant dense<0.000000e+00> : vector<16x128xf32>
    %3 = tpu.matmul %1, %2, %cst {dimension_numbers = #tpu.dot_dimension_numbers<[1], [0], [0], [1], [0, 0, 1, 1], [], []>} : vector<16x128xbf16>, vector<128x128xbf16>, vector<16x128xf32> -> vector<16x128xf32>
    %c0_4 = arith.constant 0 : index
    %c0_5 = arith.constant 0 : index
    %4 = vector.load %arg4[%c0_4, %c0_5] : memref<16x128xf32, #tpu.memory_space<vmem>>, vector<16x128xf32>
    %5 = arith.addf %3, %4 : vector<16x128xf32>
    %c0_6 = arith.constant 0 : index
    %c0_7 = arith.constant 0 : index
    %c0_8 = arith.constant 0 : index
    %6 = vector.load %arg5[%c0_6, %c0_7, %c0_8] : memref<1x16x128xf32, #tpu.memory_space<vmem>>, vector<1x16x128xf32>
    %7 = vector.shape_cast %6 : vector<1x16x128xf32> to vector<16x128xf32>
    %8 = vector.shape_cast %5 : vector<16x128xf32> to vector<1x16x128xf32>
    tpu.vector_store %arg5[%c0_6, %c0_7, %c0_8], %8 {strides = array<i32>} : memref<1x16x128xf32, #tpu.memory_space<vmem>>, vector<1x16x128xf32>,
    return
  }
  func.func @transform_0(%arg0: i32, %arg1: i32) -> (i32, i32, i32) {
    %c0_i32 = arith.constant 0 : i32
    %c0_i32_0 = arith.constant 0 : i32
    return %arg1, %arg0, %c0_i32 : i32, i32, i32
  }
  func.func @transform_1(%arg0: i32, %arg1: i32) -> (i32, i32) {
    %c0_i32 = arith.constant 0 : i32
    %c0_i32_0 = arith.constant 0 : i32
    %c0_i32_1 = arith.constant 0 : i32
    return %c0_i32, %c0_i32_0 : i32, i32
  }
  func.func @transform_2(%arg0: i32, %arg1: i32) -> (i32, i32) {
    %c0_i32 = arith.constant 0 : i32
    %c0_i32_0 = arith.constant 0 : i32
    return %arg0, %c0_i32 : i32, i32
  }
  func.func @transform_3(%arg0: i32, %arg1: i32) -> (i32, i32, i32) {
    %c0_i32 = arith.constant 0 : i32
    %c0_i32_0 = arith.constant 0 : i32
    return %arg1, %arg0, %c0_i32 : i32, i32, i32
  }
}

</mosaic_0001>

<llo_original>
// kernel: patch_embedding.1
$region0: #{patch_embedding.1}
  #allocation0 [shape = 'u32[]', space=smem, size = 0x4, offset = 0x4, fixed_abs, tag = 'smem constant byte address 0x4 - core index']
  #allocation1 [shape = 'u32[72,128]{1,0:T(1,128)}', space=vmem, size = 0x9000, scoped, tag = 'internal scratch']
  %s0 = inlined_call_operand.vmem [shape: bf16[2,16,128], index: 0, kind: input, shape index: {}]
  %s1 = inlined_call_operand.vmem [shape: bf16[128,128], index: 1, kind: input, shape index: {}]
  %s2 = inlined_call_operand.vmem [shape: f32[16,128], index: 2, kind: input, shape index: {}]
  %s3 = inlined_call_operand.hbm [shape: f32[2,16,128], index: 3, kind: output, shape index: {}]
  %s4 = sld [smem:[#allocation0]]
  $region45: #{patch_embedding.1} parent=0
    _
  %s6 = ssub.s32 1, %s4
  %s7 = scalar_select 0, %s6, %s4
  $region1: #{patch_embedding.1} parent=0
    #allocation2 [shape = 'u8[16384]{0}', space=vmem, size = 0x4000, scoped, tag = 'output window, operand 0']
    #allocation3 [shape = 's32[2]{0}', space=sflag, size = 0x8, scoped, tag = 'scoped memory for patch_embedding.1']
    %8 = vsyncpa [#allocation3], 0
    %s9 = scalar_lea.sflag [#allocation3], 1
    %10 = vsyncpa %s9, 0
    loop: start=0, step=1, limit=4
    $region2: #{patch_embedding.1} parent=1 // loop_pre_header
      _
    $region3: #{patch_embedding.1} parent=1 // loop_header
      %s12 = sphi 0, %s16
      %p13 = scmp.ge.s32.totalorder %s12, 4
      %s19 = sphi 0, %s31
      %s20 = sphi 0, %s27
      %s21 = sphi 0, %s19
      %s22 = sphi 0, %s20
      %s23 = sphi 0, %s21
      %s24 = sphi 0, %s22
      %s36 = sphi 0, %s38
      %s39 = sphi 0, %s36
      %s40 = sphi 0, %s39
      %s56 = sphi 0, %s40
      %s60 = sphi 0, %s60
      %s62 = sphi 0, %s60
      %s63 = sphi 0, %s62
      %s77 = sphi 0, %s63
      %s83 = sphi 0, %s85
      %s86 = sphi 0, %s83
      %s87 = sphi 0, %s86
      %s103 = sphi 0, %s87
      %s111 = sphi 0, %s113
      %s114 = sphi 0, %s111
      %s115 = sphi 0, %s114
      %s131 = sphi 0, %s115
    $region4: #{patch_embedding.1} parent=1 // loop_header_branch
      %15 = sbr.rel (%p13) target = $region8
    $region5: #{patch_embedding.1} parent=1 // loop_body
      %s17 = ssub.s32 %s12, 1
      %s18 = ssub.s32 %s12, 2
      %s25 = sadd.s32 1, %s20
      %p26 = scmp.ge.s32.totalorder %s25, 2
      %s27 = scalar_select %p26, 0, %s25
      %s28 = sadd.s32 1, %s19
      %s29 = scalar_select %p26, %s28, %s19
      %p30 = scmp.ge.s32.totalorder %s29, 1
      %s31 = scalar_select %p30, 0, %s29
      %s32 = ssub.s32 %s20, %s27
      %s33 = ssub.s32 %s19, %s31
      %s34 = sor.u32 %s32, %s33
      %p35 = scmp.eq.s32.totalorder %s34, 0
      %s37 = sadd.s32 %s36, 1
      %s38 = scalar_select %p35, %s36, %s37
      %p41 = pneg %p35
      %p42 = scmp.eq.s32.totalorder %s12, 1
      %p43 = por %p41, %p42
      %p44 = scmp.ne.s32.totalorder %s36, %s39
      %p45 = scmp.eq.s32.totalorder %s12, 0
      %p46 = por %p44, %p45
      %p47 = scmp.ne.s32.totalorder %s36, %s39
      %p48 = scmp.eq.s32.totalorder %s17, 1
      %p49 = por %p47, %p48
      %p50 = scmp.ne.s32.totalorder %s39, %s40
      %p51 = scmp.eq.s32.totalorder %s17, 0
      %p52 = por %p50, %p51
      %p53 = scmp.ne.s32.totalorder %s39, %s40
      %p54 = scmp.eq.s32.totalorder %s18, 1
      %p55 = por %p53, %p54
      %p57 = scmp.ne.s32.totalorder %s40, %s56
      %p58 = scmp.eq.s32.totalorder %s18, 0
      %p59 = por %p57, %p58
      %s61 = sadd.s32 %s60, 1
      %p64 = scmp.eq.s32.totalorder %s12, 1
      %p65 = scmp.ne.s32.totalorder %s60, %s62
      %p66 = scmp.eq.s32.totalorder %s12, 0
      %p67 = por %p65, %p66
      %p68 = scmp.ne.s32.totalorder %s60, %s62
      %p69 = scmp.eq.s32.totalorder %s17, 1
      %p70 = por %p68, %p69
      %p71 = scmp.ne.s32.totalorder %s62, %s63
      %p72 = scmp.eq.s32.totalorder %s17, 0
      %p73 = por %p71, %p72
      %p74 = scmp.ne.s32.totalorder %s62, %s63
      %p75 = scmp.eq.s32.totalorder %s18, 1
      %p76 = por %p74, %p75
      %p78 = scmp.ne.s32.totalorder %s63, %s77
      %p79 = scmp.eq.s32.totalorder %s18, 0
      %p80 = por %p78, %p79
      %s81 = ssub.s32 %s19, %s31
      %p82 = scmp.eq.s32.totalorder %s81, 0
      %s84 = sadd.s32 %s83, 1
      %s85 = scalar_select %p82, %s83, %s84
      %p88 = pneg %p82
      %p89 = scmp.eq.s32.totalorder %s12, 1
      %p90 = por %p88, %p89
      %p91 = scmp.ne.s32.totalorder %s83, %s86
      %p92 = scmp.eq.s32.totalorder %s12, 0
      %p93 = por %p91, %p92
      %p94 = scmp.ne.s32.totalorder %s83, %s86
      %p95 = scmp.eq.s32.totalorder %s17, 1
      %p96 = por %p94, %p95
      %p97 = scmp.ne.s32.totalorder %s86, %s87
      %p98 = scmp.eq.s32.totalorder %s17, 0
      %p99 = por %p97, %p98
      %p100 = scmp.ne.s32.totalorder %s86, %s87
      %p101 = scmp.eq.s32.totalorder %s18, 1
      %p102 = por %p100, %p101
      %p104 = scmp.ne.s32.totalorder %s87, %s103
      %p105 = scmp.eq.s32.totalorder %s18, 0
      %p106 = por %p104, %p105
      %s107 = ssub.s32 %s20, %s27
      %s108 = ssub.s32 %s19, %s31
      %s109 = sor.u32 %s107, %s108
      %p110 = scmp.eq.s32.totalorder %s109, 0
      %s112 = sadd.s32 %s111, 1
      %s113 = scalar_select %p110, %s111, %s112
      %p116 = pneg %p110
      %p117 = scmp.eq.s32.totalorder %s12, 1
      %p118 = por %p116, %p117
      %p119 = scmp.ne.s32.totalorder %s111, %s114
      %p120 = scmp.eq.s32.totalorder %s12, 0
      %p121 = por %p119, %p120
      %p122 = scmp.ne.s32.totalorder %s111, %s114
      %p123 = scmp.eq.s32.totalorder %s17, 1
      %p124 = por %p122, %p123
      %p125 = scmp.ne.s32.totalorder %s114, %s115
      %p126 = scmp.eq.s32.totalorder %s17, 0
      %p127 = por %p125, %p126
      %p128 = scmp.ne.s32.totalorder %s114, %s115
      %p129 = scmp.eq.s32.totalorder %s18, 1
      %p130 = por %p128, %p129
      %p132 = scmp.ne.s32.totalorder %s115, %s131
      %p133 = scmp.eq.s32.totalorder %s18, 0
      %p134 = por %p132, %p133
      %p135 = scmp.le.s32.totalorder 1, %s12
      %p136 = scmp.lt.s32.totalorder %s12, 3
      %p137 = pnand %p135, %p136
      %p138 = pneg %p137
      // Predicated region
      $region9: #{patch_embedding.1} parent=5 // pred_check
        _
      $region10: #{patch_embedding.1} parent=5 // pred_check_branch
        %140 = sbr.rel (%p137) target = $region12
      $region11: #{patch_embedding.1} parent=5 // pred_region
        %s141 = ssub.s32 %s12, 1
        // Predicated region
        $region13: #{patch_embedding.1} parent=11 // pred_check
          %p142 = pneg %p73
        $region14: #{patch_embedding.1} parent=11 // pred_check_branch
          %144 = sbr.rel (%p142) target = $region16
        $region15: #{patch_embedding.1} parent=11 // pred_region
          _
        $region16: #{patch_embedding.1} parent=11 // pred_fallthru
          _
        // Predicated region
        $region17: #{patch_embedding.1} parent=11 // pred_check
          %p145 = pneg %p99
        $region18: #{patch_embedding.1} parent=11 // pred_check_branch
          %147 = sbr.rel (%p145) target = $region20
        $region19: #{patch_embedding.1} parent=11 // pred_region
          %s148 = smul.u32 2, %s21
          %p149 = scmp.lt.s32.totalorder %s148, 1
          %s150 = scalar_select %p149, %s148, 1
          %s151 = smul.addr %s150, 8
          %s152 = scalar_lea.vmem %s2, %s151
          %s153 = smul.u32 2, %s21
        $region20: #{patch_embedding.1} parent=11 // pred_fallthru
          _
      $region12: #{patch_embedding.1} parent=5 // pred_fallthru
        _
      %p154 = scmp.lt.s32.totalorder %s12, 2
      // Predicated region
      $region21: #{patch_embedding.1} parent=5 // pred_check
        %p155 = pneg %p154
      $region22: #{patch_embedding.1} parent=5 // pred_check_branch
        %157 = sbr.rel (%p155) target = $region24
      $region23: #{patch_embedding.1} parent=5 // pred_region
        // Predicated region
        $region25: #{patch_embedding.1} parent=23 // pred_check
          %p158 = pneg %p46
        $region26: #{patch_embedding.1} parent=23 // pred_check_branch
          %160 = sbr.rel (%p158) target = $region28
        $region27: #{patch_embedding.1} parent=23 // pred_region
          %s161 = smul.u32 2, %s19
          %p162 = scmp.lt.s32.totalorder %s20, 1
          %s163 = scalar_select %p162, %s20, 1
          %p164 = scmp.lt.s32.totalorder %s161, 1
          %s165 = scalar_select %p164, %s161, 1
          %s166 = smul.addr %s163, 2
          %s167 = sadd.s32 %s165, %s166
          %s168 = smul.addr %s167, 4
          %s169 = scalar_lea.vmem %s0, %s168
          %s170 = smul.u32 2, %s19
        $region28: #{patch_embedding.1} parent=23 // pred_fallthru
          _
      $region24: #{patch_embedding.1} parent=5 // pred_fallthru
        _
      %p171 = scmp.le.s32.totalorder 1, %s12
      %p172 = scmp.lt.s32.totalorder %s12, 3
      %p173 = pnand %p171, %p172
      %p174 = pneg %p173
      // Predicated region
      $region29: #{patch_embedding.1} parent=5 // pred_check
        _
      $region30: #{patch_embedding.1} parent=5 // pred_check_branch
        %176 = sbr.rel (%p173) target = $region32
      $region31: #{patch_embedding.1} parent=5 // pred_region
        %s177 = ssub.s32 %s12, 1
        %s178 = smul.u32 2, %s21
        %p179 = scmp.lt.s32.totalorder %s22, 1
        %s180 = scalar_select %p179, %s22, 1
        %p181 = scmp.lt.s32.totalorder %s178, 1
        %s182 = scalar_select %p181, %s178, 1
        %s183 = smul.addr %s180, 2
        %s184 = sadd.s32 %s182, %s183
        %s185 = smul.addr %s184, 4
        %s186 = scalar_lea.vmem %s0, %s185
        %p187 = pneg %p52
        %p188 = pneg %p49
        %p189 = pneg %p73
        %p190 = pneg %p70
        %s191 = smul.u32 2, %s21
        %p192 = scmp.lt.s32.totalorder %s191, 1
        %s193 = scalar_select %p192, %s191, 1
        %s194 = smul.addr %s193, 8
        %s195 = scalar_lea.vmem %s2, %s194
        %p196 = pneg %p99
        %p197 = pneg %p96
        %p198 = pneg %p127
        %p199 = pneg %p124
        %s200 = sand.u32 %s114, 1
        %s201 = scalar_lea.sflag [#allocation3], %s200
        %s202 = sand.u32 %s114, 1
        %s203 = smul.addr %s202, 16
        %s204 = scalar_lea.vmem [#allocation2], %s203
        %s205 = smul.u32 2, %s21
        %p206 = scmp.lt.s32.totalorder %s22, 1
        %s207 = scalar_select %p206, %s22, 1
        %p208 = scmp.lt.s32.totalorder %s205, 1
        %s209 = scalar_select %p208, %s205, 1
        %s210 = smul.addr %s207, 2
        %s211 = sadd.s32 %s209, %s210
        %s212 = smul.addr %s211, 4
        %s213 = scalar_lea.vmem %s0, %s212
        %s214 = smul.u32 2, %s21
        %s215 = smul.u32 2, %s21
        %p216 = scmp.lt.s32.totalorder %s215, 1
        %s217 = scalar_select %p216, %s215, 1
        %s218 = smul.addr %s217, 8
        %s219 = scalar_lea.vmem %s2, %s218
        %s220 = smul.u32 2, %s21
        %s221 = smul.u32 2, %s21
        %v222 = vld [vmem:[%s213] sm:$0xf]
        %v223 = vld [vmem:[%s213 + $0x4] sm:$0xf]
        %v224 = vld [vmem:[%s1] sm:$0xf]
        %v225 = vld [vmem:[%s1 + $0x4] sm:$0xf]
        %v226 = vld [vmem:[%s1 + $0x8] sm:$0xf]
        %v227 = vld [vmem:[%s1 + $0xc] sm:$0xf]
        %v228 = vld [vmem:[%s1 + $0x10] sm:$0xf]
        %v229 = vld [vmem:[%s1 + $0x14] sm:$0xf]
        %v230 = vld [vmem:[%s1 + $0x18] sm:$0xf]
        %v231 = vld [vmem:[%s1 + $0x1c] sm:$0xf]
        %v232 = vld [vmem:[%s1 + $0x20] sm:$0xf]
        %v233 = vld [vmem:[%s1 + $0x24] sm:$0xf]
        %v234 = vld [vmem:[%s1 + $0x28] sm:$0xf]
        %v235 = vld [vmem:[%s1 + $0x2c] sm:$0xf]
        %v236 = vld [vmem:[%s1 + $0x30] sm:$0xf]
        %v237 = vld [vmem:[%s1 + $0x34] sm:$0xf]
        %v238 = vld [vmem:[%s1 + $0x38] sm:$0xf]
        %v239 = vld [vmem:[%s1 + $0x3c] sm:$0xf]
        %v240 = vld [vmem:[%s219] sm:$0xff]
        %v241 = vld [vmem:[%s219 + $0x8] sm:$0xff]
        %v244 = vunpack.c.l.b16 %v222
        %v245 = vunpack.c.l.b16 %v223
        %v246 = vpack.c.b16 %v245, %v244
        %v264 = vunpack.c.l.b16 %v224
        %v265 = vunpack.c.l.b16 %v225
        %v266 = vunpack.c.l.b16 %v226
        %v267 = vunpack.c.l.b16 %v227
        %v268 = vunpack.c.l.b16 %v228
        %v269 = vunpack.c.l.b16 %v229
        %v270 = vunpack.c.l.b16 %v230
        %v271 = vunpack.c.l.b16 %v231
        %v272 = vunpack.c.l.b16 %v232
        %v273 = vunpack.c.l.b16 %v233
        %v274 = vunpack.c.l.b16 %v234
        %v275 = vunpack.c.l.b16 %v235
        %v276 = vunpack.c.l.b16 %v236
        %v277 = vunpack.c.l.b16 %v237
        %v278 = vunpack.c.l.b16 %v238
        %v279 = vunpack.c.l.b16 %v239
        %v280 = vpack.c.b16 %v265, %v264
        %v281 = vpack.c.b16 %v267, %v266
        %v282 = vpack.c.b16 %v269, %v268
        %v283 = vpack.c.b16 %v271, %v270
        %v284 = vpack.c.b16 %v273, %v272
        %v285 = vpack.c.b16 %v275, %v274
        %v286 = vpack.c.b16 %v277, %v276
        %v287 = vpack.c.b16 %v279, %v278
        %296 = vmatpush.bf16.msra.mxu0 %v287
        %297 = vmatpush.bf16.msra.mxu0 %v286
        %298 = vmatpush.bf16.msra.mxu0 %v285
        %299 = vmatpush.bf16.msra.mxu0 %v284
        %300 = vmatpush.bf16.msra.mxu0 %v283
        %301 = vmatpush.bf16.msra.mxu0 %v282
        %302 = vmatpush.bf16.msra.mxu0 %v281
        %303 = vmatpush.bf16.msra.mxu0 %v280
        %304 = vmatmul.bf16.gmra.mxu0 %v246
        %v305 = vpop.f32.mrf.mxu0
        %v306 = vadd.f32 %v240, %v305
        %v307 = vpop.f32.mrf.mxu0
        %v308 = vadd.f32 %v241, %v307
        %309 = vdwg.mxu0
        %310 = vst [vmem:[%s204] sm:$0xff] %v306
        %311 = vst [vmem:[%s204 + $0x8] sm:$0xff] %v308
        %s312 = sand.u32 %s114, 1
        %s313 = scalar_lea.sflag [#allocation3], %s312
        %s314 = sand.u32 %s114, 1
        %s315 = smul.addr %s314, 16
        %s316 = scalar_lea.vmem [#allocation2], %s315
        // Predicated region
        $region33: #{patch_embedding.1} parent=31 // pred_check
          %p317 = pneg %p124
        $region34: #{patch_embedding.1} parent=31 // pred_check_branch
          %319 = sbr.rel (%p317) target = $region36
        $region35: #{patch_embedding.1} parent=31 // pred_region
          %s320 = smul.u32 2, %s21
          %322 = vsyncadd %s313, 0
          %s323 = smul.addr %s22, 2
          %s324 = sadd.s32 %s320, %s323
          %s325 = smul.addr %s324, 8
          %s326 = scalar_lea.hbm %s3, %s325
          %s327 = sshll.u32 %s316, 4
          %s328 = int_to_ptr.vmem [resolvable:$true] %s327
          %s329 = sshll.u32 %s326, 4
          %s330 = int_to_ptr.hbm [resolvable:$true] %s329
          %335 = dma.vmem_to_hbm [thread:$0]  %s328, 256, %s330, %s313, 128, 128, 8
        $region36: #{patch_embedding.1} parent=31 // pred_fallthru
          _
      $region32: #{patch_embedding.1} parent=5 // pred_fallthru
        _
      %p336 = scmp.le.s32.totalorder 2, %s12
      // Predicated region
      $region37: #{patch_embedding.1} parent=5 // pred_check
        %p337 = pneg %p336
      $region38: #{patch_embedding.1} parent=5 // pred_check_branch
        %339 = sbr.rel (%p337) target = $region40
      $region39: #{patch_embedding.1} parent=5 // pred_region
        %s340 = ssub.s32 %s12, 2
        // Predicated region
        $region41: #{patch_embedding.1} parent=39 // pred_check
          %p341 = pneg %p130
        $region42: #{patch_embedding.1} parent=39 // pred_check_branch
          %343 = sbr.rel (%p341) target = $region44
        $region43: #{patch_embedding.1} parent=39 // pred_region
          %s344 = sand.u32 %s115, 1
          %s345 = scalar_lea.sflag [#allocation3], %s344
          %s346 = sand.u32 %s115, 1
          %s347 = smul.addr %s346, 16
          %s348 = scalar_lea.vmem [#allocation2], %s347
          %350 = dma.done %s345, 256
        $region44: #{patch_embedding.1} parent=39 // pred_fallthru
          _
      $region40: #{patch_embedding.1} parent=5 // pred_fallthru
        _
    $region6: #{patch_embedding.1} parent=1 // loop_footer
      %s16 = sadd.s32 1, %s12
    $region7: #{patch_embedding.1} parent=1 // loop_footer_branch
      %11 = sbr.rel target = $region3
    $region8: #{patch_embedding.1} parent=1 // loop_exit
      _
    %351 = vsyncpa [#allocation3], 1
    %s352 = scalar_lea.sflag [#allocation3], 1
    %353 = vsyncpa %s352, 1

</llo_original>
